<compile_context>
chip_gen: v5e
topology: v5e:2x2
jax: 0.10.0
libtpu: 0.0.40
codegen_flags: <defaults>
</compile_context>

<pallas_src>
import functools

import jax
import jax.numpy as jnp
from jax.experimental import pallas as pl
from jax.experimental.pallas import tpu as pltpu


def _fused_layer_kernel(x_ref, w_ref, shift_ref, o_ref, col_ref, *, K, C_in, L):
    """One grid step = one sequence: im2col into scratch, one matmul, epilogue.

    x_ref     : (C_in, L + K - 1)  bf16  one sequence, per-sequence zero halo baked in
    w_ref     : (C_total, K*C_in)  bf16  BN-scale-folded, branch-fused, im2col layout
    shift_ref : (C_total, 1)       f32   folded BN shift  (beta + scale*(bias - mean))
    o_ref     : (C_total, L)       f32   concatenated-channel output (PyTorch layout)
    col_ref   : (K*C_in, L)        bf16  VMEM scratch: stacked shifted windows (im2col)
    """
    # Build the stacked window operand ONCE (K static slices into scratch);
    # no masking needed because the halo zeros are per-sequence already.
    for t in range(K):                                   # static unroll, K <= 7
        col_ref[t * C_in:(t + 1) * C_in, :] = x_ref[:, t:t + L]
    # Single MXU matmul, contraction depth K*C_in, f32 accumulation.
    y = jnp.dot(w_ref[...], col_ref[...], preferred_element_type=jnp.float32)
    y = y + shift_ref[...]                               # f32 epilogue (v5e-safe)
    o_ref[...] = jnp.maximum(y, 0.0).astype(o_ref.dtype)


def build_layer_forward(x, params, eps=1e-5):
    """Fused SampaddingConv1D_BN branches + concat + ReLU as one pallas_call."""
    N, C_in, L = x.shape
    ks = [p["w"].shape[-1] for p in params]
    couts = [p["w"].shape[0] for p in params]
    assert all(p["w"].shape[1] == C_in for p in params), "branches must share in_channels"
    K = max(ks)
    pad_left, pad_right = (K - 1) // 2, K // 2
    C_total = sum(couts)
    Lp = L + K - 1

    # ---- fold every branch into one virtual width-K im2col weight (host, param-only) ----
    W_all = jnp.zeros((K, C_total, C_in), jnp.float32)
    shift_all = jnp.zeros((C_total,), jnp.float32)
    c_off = 0
    for p, k, c_out in zip(params, ks, couts):
        scale = p["gamma"] / jnp.sqrt(p["rvar"] + eps)            # (c_out,)
        shift = p["beta"] + scale * (p["b"] - p["rmean"])          # unfolded scale here!
        w_fold = p["w"] * scale[:, None, None]                     # BN scale -> weights
        t_off = pad_left - (k - 1) // 2                            # align taps inside K
        wt = jnp.transpose(w_fold, (2, 0, 1))                      # (k, c_out, c_in)
        W_all = W_all.at[t_off:t_off + k, c_off:c_off + c_out, :].set(wt)
        shift_all = shift_all.at[c_off:c_off + c_out].set(shift)
        c_off += c_out
    # im2col weight layout: row o, column t*C_in + c  <->  tap t, input channel c.
    W2 = jnp.transpose(W_all, (1, 0, 2)).reshape(C_total, K * C_in).astype(jnp.bfloat16)
    shift2 = shift_all.reshape(C_total, 1).astype(jnp.float32)

    # ---- per-sequence zero halo on the contiguous last axis only (no transposes) ----
    x_pad = jnp.pad(x, ((0, 0), (0, 0), (pad_left, pad_right))).astype(jnp.bfloat16)

    kernel = functools.partial(_fused_layer_kernel, K=K, C_in=C_in, L=L)

    out = pl.pallas_call(
        kernel,
        out_shape=jax.ShapeDtypeStruct((N, C_total, L), jnp.float32),
        grid_spec=pltpu.PrefetchScalarGridSpec(
            num_scalar_prefetch=0,
            grid=(N,),  # one sequence per step; tile L too at production lengths
            in_specs=[
                pl.BlockSpec((None, C_in, Lp), lambda n: (n, 0, 0)),
                pl.BlockSpec((C_total, K * C_in), lambda n: (0, 0)),
                pl.BlockSpec((C_total, 1), lambda n: (0, 0)),
            ],
            out_specs=pl.BlockSpec((None, C_total, L), lambda n: (n, 0, 0)),
            scratch_shapes=[pltpu.VMEM((K * C_in, L), jnp.bfloat16)],
        ),
        compiler_params=pltpu.CompilerParams(
            dimension_semantics=("parallel",)),  # shards across v7x's 2 TensorCores
    )(x_pad, W2, shift2)

    return out  # already (N, C_total, L): no output reshape/transpose round trip


def _reference_forward(x, params, eps=1e-5):
    """Pure-JAX f32 reference (lax conv) matching the PyTorch module semantics."""
    outs = []
    for p in params:
        w, b = p["w"], p["b"]
        K = w.shape[-1]
        pad_l, pad_r = (K - 1) // 2, K // 2
        y = jax.lax.conv_general_dilated(
            x, w, window_strides=(1,), padding=[(pad_l, pad_r)],
            dimension_numbers=("NCH", "OIH", "NCH"))
        y = y + b[None, :, None]
        scale = p["gamma"] / jnp.sqrt(p["rvar"] + eps)
        y = scale[None, :, None] * (y - p["rmean"][None, :, None]) \
            + p["beta"][None, :, None]
        outs.append(y)
    return jax.nn.relu(jnp.concatenate(outs, axis=1))


def make_params(key, layer_parameters):
    params = []
    for (c_in, c_out, k) in layer_parameters:
        key, k1, k2, k3, k4, k5, k6 = jax.random.split(key, 7)
        params.append(dict(
            w=jax.random.normal(k1, (c_out, c_in, k), jnp.float32) * 0.1,
            b=jax.random.normal(k2, (c_out,), jnp.float32) * 0.1,
            gamma=1.0 + 0.1 * jax.random.normal(k3, (c_out,), jnp.float32),
            beta=0.1 * jax.random.normal(k4, (c_out,), jnp.float32),
            rmean=0.1 * jax.random.normal(k5, (c_out,), jnp.float32),
            rvar=1.0 + 0.1 * jnp.abs(jax.random.normal(k6, (c_out,), jnp.float32)),
        ))
    return params


if __name__ == "__main__":
    # Small shapes consistent with the module: batch=2, in_channels=4, length=16.
    layer_parameters = [(4, 8, 3), (4, 8, 5), (4, 6, 7)]
    key = jax.random.PRNGKey(0)
    key, kx = jax.random.split(key)
    x = jax.random.normal(kx, (2, 4, 16), jnp.float32)

    params = make_params(key, layer_parameters)

    out = build_layer_forward(x, params)
    out = jax.block_until_ready(out)

    ref = _reference_forward(x, params)
    assert out.shape == ref.shape == (2, 8 + 8 + 6, 16)
    # Tolerance accounts for bf16 MXU operands (f32 accumulation) vs. the f32 reference.
    assert jnp.allclose(out, ref, atol=5e-2, rtol=5e-2), "mismatch vs JAX reference"

    print("KERNEL_OK")
</pallas_src>

<mosaic_0001>
module attributes {stable_mosaic.version = 11 : i64} {
  func.func @_fused_layer_kernel(%arg0: i32, %arg1: memref<1x4x22xbf16, #tpu.memory_space<vmem>>, %arg2: memref<22x28xbf16, #tpu.memory_space<vmem>>, %arg3: memref<22x1xf32, #tpu.memory_space<vmem>>, %arg4: memref<1x22x16xf32, #tpu.memory_space<vmem>>, %arg5: memref<28x16xbf16, #tpu.memory_space<vmem>>) attributes {dimension_semantics = [#tpu.dimension_semantics<parallel>], iteration_bounds = array<i64: 2>, scalar_prefetch = 0 : i64, scratch_operands = 1 : i64, tpu.core_type = #tpu.core_type<tc>, window_params = [{transform_indices = @transform_0, window_bounds = array<i64: 1, 4, 22>}, {pipeline_mode = #tpu.pipeline_mode<synchronous>, transform_indices = @transform_1, window_bounds = array<i64: 22, 28>}, {pipeline_mode = #tpu.pipeline_mode<synchronous>, transform_indices = @transform_2, window_bounds = array<i64: 22, 1>}, {transform_indices = @transform_3, window_bounds = array<i64: 1, 22, 16>}]} {
    %c0 = arith.constant 0 : index
    %c0_0 = arith.constant 0 : index
    %c0_1 = arith.constant 0 : index
    %0 = vector.load %arg1[%c0, %c0_0, %c0_1] : memref<1x4x22xbf16, #tpu.memory_space<vmem>>, vector<1x4x16xbf16>
    %1 = vector.shape_cast %0 : vector<1x4x16xbf16> to vector<4x16xbf16>
    %c0_2 = arith.constant 0 : index
    %c0_3 = arith.constant 0 : index
    %2 = vector.load %arg5[%c0_2, %c0_3] : memref<28x16xbf16, #tpu.memory_space<vmem>>, vector<4x16xbf16>
    tpu.vector_store %arg5[%c0_2, %c0_3], %1 {strides = array<i32>} : memref<28x16xbf16, #tpu.memory_space<vmem>>, vector<4x16xbf16>,
    %c0_4 = arith.constant 0 : index
    %c0_5 = arith.constant 0 : index
    %c1 = arith.constant 1 : index
    %3 = vector.load %arg1[%c0_4, %c0_5, %c1] : memref<1x4x22xbf16, #tpu.memory_space<vmem>>, vector<1x4x16xbf16>
    %4 = vector.shape_cast %3 : vector<1x4x16xbf16> to vector<4x16xbf16>
    %c4 = arith.constant 4 : index
    %c0_6 = arith.constant 0 : index
    %5 = vector.load %arg5[%c4, %c0_6] : memref<28x16xbf16, #tpu.memory_space<vmem>>, vector<4x16xbf16>
    tpu.vector_store %arg5[%c4, %c0_6], %4 {strides = array<i32>} : memref<28x16xbf16, #tpu.memory_space<vmem>>, vector<4x16xbf16>,
    %c0_7 = arith.constant 0 : index
    %c0_8 = arith.constant 0 : index
    %c2 = arith.constant 2 : index
    %6 = vector.load %arg1[%c0_7, %c0_8, %c2] : memref<1x4x22xbf16, #tpu.memory_space<vmem>>, vector<1x4x16xbf16>
    %7 = vector.shape_cast %6 : vector<1x4x16xbf16> to vector<4x16xbf16>
    %c8 = arith.constant 8 : index
    %c0_9 = arith.constant 0 : index
    %8 = vector.load %arg5[%c8, %c0_9] : memref<28x16xbf16, #tpu.memory_space<vmem>>, vector<4x16xbf16>
    tpu.vector_store %arg5[%c8, %c0_9], %7 {strides = array<i32>} : memref<28x16xbf16, #tpu.memory_space<vmem>>, vector<4x16xbf16>,
    %c0_10 = arith.constant 0 : index
    %c0_11 = arith.constant 0 : index
    %c3 = arith.constant 3 : index
    %9 = vector.load %arg1[%c0_10, %c0_11, %c3] : memref<1x4x22xbf16, #tpu.memory_space<vmem>>, vector<1x4x16xbf16>
    %10 = vector.shape_cast %9 : vector<1x4x16xbf16> to vector<4x16xbf16>
    %c12 = arith.constant 12 : index
    %c0_12 = arith.constant 0 : index
    %11 = vector.load %arg5[%c12, %c0_12] : memref<28x16xbf16, #tpu.memory_space<vmem>>, vector<4x16xbf16>
    tpu.vector_store %arg5[%c12, %c0_12], %10 {strides = array<i32>} : memref<28x16xbf16, #tpu.memory_space<vmem>>, vector<4x16xbf16>,
    %c0_13 = arith.constant 0 : index
    %c0_14 = arith.constant 0 : index
    %c4_15 = arith.constant 4 : index
    %12 = vector.load %arg1[%c0_13, %c0_14, %c4_15] : memref<1x4x22xbf16, #tpu.memory_space<vmem>>, vector<1x4x16xbf16>
    %13 = vector.shape_cast %12 : vector<1x4x16xbf16> to vector<4x16xbf16>
    %c16 = arith.constant 16 : index
    %c0_16 = arith.constant 0 : index
    %14 = vector.load %arg5[%c16, %c0_16] : memref<28x16xbf16, #tpu.memory_space<vmem>>, vector<4x16xbf16>
    tpu.vector_store %arg5[%c16, %c0_16], %13 {strides = array<i32>} : memref<28x16xbf16, #tpu.memory_space<vmem>>, vector<4x16xbf16>,
    %c0_17 = arith.constant 0 : index
    %c0_18 = arith.constant 0 : index
    %c5 = arith.constant 5 : index
    %15 = vector.load %arg1[%c0_17, %c0_18, %c5] : memref<1x4x22xbf16, #tpu.memory_space<vmem>>, vector<1x4x16xbf16>
    %16 = vector.shape_cast %15 : vector<1x4x16xbf16> to vector<4x16xbf16>
    %c20 = arith.constant 20 : index
    %c0_19 = arith.constant 0 : index
    %17 = vector.load %arg5[%c20, %c0_19] : memref<28x16xbf16, #tpu.memory_space<vmem>>, vector<4x16xbf16>
    tpu.vector_store %arg5[%c20, %c0_19], %16 {strides = array<i32>} : memref<28x16xbf16, #tpu.memory_space<vmem>>, vector<4x16xbf16>,
    %c0_20 = arith.constant 0 : index
    %c0_21 = arith.constant 0 : index
    %c6 = arith.constant 6 : index
    %18 = vector.load %arg1[%c0_20, %c0_21, %c6] : memref<1x4x22xbf16, #tpu.memory_space<vmem>>, vector<1x4x16xbf16>
    %19 = vector.shape_cast %18 : vector<1x4x16xbf16> to vector<4x16xbf16>
    %c24 = arith.constant 24 : index
    %c0_22 = arith.constant 0 : index
    %20 = vector.load %arg5[%c24, %c0_22] : memref<28x16xbf16, #tpu.memory_space<vmem>>, vector<4x16xbf16>
    tpu.vector_store %arg5[%c24, %c0_22], %19 {strides = array<i32>} : memref<28x16xbf16, #tpu.memory_space<vmem>>, vector<4x16xbf16>,
    %c0_23 = arith.constant 0 : index
    %c0_24 = arith.constant 0 : index
    %21 = vector.load %arg2[%c0_23, %c0_24] : memref<22x28xbf16, #tpu.memory_space<vmem>>, vector<22x28xbf16>
    %c0_25 = arith.constant 0 : index
    %c0_26 = arith.constant 0 : index
    %22 = vector.load %arg5[%c0_25, %c0_26] : memref<28x16xbf16, #tpu.memory_space<vmem>>, vector<28x16xbf16>
    %cst = arith.constant dense<0.000000e+00> : vector<22x16xf32>
    %23 = tpu.matmul %21, %22, %cst {dimension_numbers = #tpu.dot_dimension_numbers<[1], [0], [0], [1], [0, 0, 1, 1], [], []>} : vector<22x28xbf16>, vector<28x16xbf16>, vector<22x16xf32> -> vector<22x16xf32>
    %c0_27 = arith.constant 0 : index
    %c0_28 = arith.constant 0 : index
    %24 = vector.load %arg3[%c0_27, %c0_28] : memref<22x1xf32, #tpu.memory_space<vmem>>, vector<22x1xf32>
    %25 = vector.broadcast %24 : vector<22x1xf32> to vector<22x16xf32>
    %26 = arith.addf %23, %25 : vector<22x16xf32>
    %cst_29 = arith.constant 0.000000e+00 : f32
    %27 = vector.broadcast %cst_29 : f32 to vector<22x16xf32>
    %28 = arith.maximumf %26, %27 : vector<22x16xf32>
    %c0_30 = arith.constant 0 : index
    %c0_31 = arith.constant 0 : index
    %c0_32 = arith.constant 0 : index
    %29 = vector.load %arg4[%c0_30, %c0_31, %c0_32] : memref<1x22x16xf32, #tpu.memory_space<vmem>>, vector<1x22x16xf32>
    %30 = vector.shape_cast %29 : vector<1x22x16xf32> to vector<22x16xf32>
    %31 = vector.shape_cast %28 : vector<22x16xf32> to vector<1x22x16xf32>
    tpu.vector_store %arg4[%c0_30, %c0_31, %c0_32], %31 {strides = array<i32>} : memref<1x22x16xf32, #tpu.memory_space<vmem>>, vector<1x22x16xf32>,
    return
  }
  func.func @transform_0(%arg0: i32) -> (i32, i32, i32) {
    %c0_i32 = arith.constant 0 : i32
    %c0_i32_0 = arith.constant 0 : i32
    %c0_i32_1 = arith.constant 0 : i32
    return %arg0, %c0_i32, %c0_i32_0 : i32, i32, i32
  }
  func.func @transform_1(%arg0: i32) -> (i32, i32) {
    %c0_i32 = arith.constant 0 : i32
    %c0_i32_0 = arith.constant 0 : i32
    %c0_i32_1 = arith.constant 0 : i32
    return %c0_i32, %c0_i32_0 : i32, i32
  }
  func.func @transform_2(%arg0: i32) -> (i32, i32) {
    %c0_i32 = arith.constant 0 : i32
    %c0_i32_0 = arith.constant 0 : i32
    %c0_i32_1 = arith.constant 0 : i32
    return %c0_i32, %c0_i32_0 : i32, i32
  }
  func.func @transform_3(%arg0: i32) -> (i32, i32, i32) {
    %c0_i32 = arith.constant 0 : i32
    %c0_i32_0 = arith.constant 0 : i32
    %c0_i32_1 = arith.constant 0 : i32
    return %arg0, %c0_i32, %c0_i32_0 : i32, i32, i32
  }
}

</mosaic_0001>

<llo_original>
// kernel: tpu_custom_call.1
$region0: #{tpu_custom_call.1}
  #allocation0 [shape = 'u32[]', space=smem, size = 0x4, offset = 0x4, fixed_abs, tag = 'smem constant byte address 0x4 - core index']
  #allocation1 [shape = 'u32[72,128]{1,0:T(1,128)}', space=vmem, size = 0x9000, scoped, tag = 'internal scratch']
  #allocation2 [shape = 'bf16[28,16]{1,0:T(8,128)(2,1)}', space=vmem, size = 0x2000, scoped, tag = 'scratch operand']
  %s0 = inlined_call_operand.vmem [shape: bf16[2,4,22], index: 0, kind: input, shape index: {}]
  %s1 = inlined_call_operand.vmem [shape: bf16[22,28], index: 1, kind: input, shape index: {}]
  %s2 = inlined_call_operand.vmem [shape: f32[22,1], index: 2, kind: input, shape index: {}]
  %s3 = inlined_call_operand.vmem [shape: f32[2,22,16], index: 3, kind: output, shape index: {}]
  %s4 = sld [smem:[#allocation0]]
  $region45: #{tpu_custom_call.1} parent=0
    _
  %s6 = ssub.s32 1, %s4
  %s7 = scalar_select 0, %s6, %s4
  loop: start=0, step=1, limit=4
  $region2: #{tpu_custom_call.1} parent=0 // loop_pre_header
    _
  $region3: #{tpu_custom_call.1} parent=0 // loop_header
    %s9 = sphi 0, %s13
    %p10 = scmp.ge.s32.totalorder %s9, 4
    %s19 = sphi 0, %s21
    %s22 = sphi 0, %s19
    %s23 = sphi 0, %s22
    %s39 = sphi 0, %s23
    %s43 = sphi 0, %s43
    %s45 = sphi 0, %s43
    %s46 = sphi 0, %s45
    %s60 = sphi 0, %s46
    %s64 = sphi 0, %s64
    %s66 = sphi 0, %s64
    %s67 = sphi 0, %s66
    %s81 = sphi 0, %s67
    %s87 = sphi 0, %s89
    %s90 = sphi 0, %s87
    %s91 = sphi 0, %s90
    %s107 = sphi 0, %s91
  $region4: #{tpu_custom_call.1} parent=0 // loop_header_branch
    %12 = sbr.rel (%p10) target = $region8
  $region5: #{tpu_custom_call.1} parent=0 // loop_body
    %s14 = ssub.s32 %s9, 1
    %s15 = ssub.s32 %s9, 2
    %s16 = sadd.s32 %s9, 1
    %s17 = ssub.s32 %s9, %s16
    %p18 = scmp.eq.s32.totalorder %s17, 0
    %s20 = sadd.s32 %s19, 1
    %s21 = scalar_select %p18, %s19, %s20
    %p24 = pneg %p18
    %p25 = scmp.eq.s32.totalorder %s9, 1
    %p26 = por %p24, %p25
    %p27 = scmp.ne.s32.totalorder %s19, %s22
    %p28 = scmp.eq.s32.totalorder %s9, 0
    %p29 = por %p27, %p28
    %p30 = scmp.ne.s32.totalorder %s19, %s22
    %p31 = scmp.eq.s32.totalorder %s14, 1
    %p32 = por %p30, %p31
    %p33 = scmp.ne.s32.totalorder %s22, %s23
    %p34 = scmp.eq.s32.totalorder %s14, 0
    %p35 = por %p33, %p34
    %p36 = scmp.ne.s32.totalorder %s22, %s23
    %p37 = scmp.eq.s32.totalorder %s15, 1
    %p38 = por %p36, %p37
    %p40 = scmp.ne.s32.totalorder %s23, %s39
    %p41 = scmp.eq.s32.totalorder %s15, 0
    %p42 = por %p40, %p41
    %s44 = sadd.s32 %s43, 1
    %p47 = scmp.eq.s32.totalorder %s9, 1
    %p48 = scmp.ne.s32.totalorder %s43, %s45
    %p49 = scmp.eq.s32.totalorder %s9, 0
    %p50 = por %p48, %p49
    %p51 = scmp.ne.s32.totalorder %s43, %s45
    %p52 = scmp.eq.s32.totalorder %s14, 1
    %p53 = por %p51, %p52
    %p54 = scmp.ne.s32.totalorder %s45, %s46
    %p55 = scmp.eq.s32.totalorder %s14, 0
    %p56 = por %p54, %p55
    %p57 = scmp.ne.s32.totalorder %s45, %s46
    %p58 = scmp.eq.s32.totalorder %s15, 1
    %p59 = por %p57, %p58
    %p61 = scmp.ne.s32.totalorder %s46, %s60
    %p62 = scmp.eq.s32.totalorder %s15, 0
    %p63 = por %p61, %p62
    %s65 = sadd.s32 %s64, 1
    %p68 = scmp.eq.s32.totalorder %s9, 1
    %p69 = scmp.ne.s32.totalorder %s64, %s66
    %p70 = scmp.eq.s32.totalorder %s9, 0
    %p71 = por %p69, %p70
    %p72 = scmp.ne.s32.totalorder %s64, %s66
    %p73 = scmp.eq.s32.totalorder %s14, 1
    %p74 = por %p72, %p73
    %p75 = scmp.ne.s32.totalorder %s66, %s67
    %p76 = scmp.eq.s32.totalorder %s14, 0
    %p77 = por %p75, %p76
    %p78 = scmp.ne.s32.totalorder %s66, %s67
    %p79 = scmp.eq.s32.totalorder %s15, 1
    %p80 = por %p78, %p79
    %p82 = scmp.ne.s32.totalorder %s67, %s81
    %p83 = scmp.eq.s32.totalorder %s15, 0
    %p84 = por %p82, %p83
    %s85 = ssub.s32 %s9, %s16
    %p86 = scmp.eq.s32.totalorder %s85, 0
    %s88 = sadd.s32 %s87, 1
    %s89 = scalar_select %p86, %s87, %s88
    %p92 = pneg %p86
    %p93 = scmp.eq.s32.totalorder %s9, 1
    %p94 = por %p92, %p93
    %p95 = scmp.ne.s32.totalorder %s87, %s90
    %p96 = scmp.eq.s32.totalorder %s9, 0
    %p97 = por %p95, %p96
    %p98 = scmp.ne.s32.totalorder %s87, %s90
    %p99 = scmp.eq.s32.totalorder %s14, 1
    %p100 = por %p98, %p99
    %p101 = scmp.ne.s32.totalorder %s90, %s91
    %p102 = scmp.eq.s32.totalorder %s14, 0
    %p103 = por %p101, %p102
    %p104 = scmp.ne.s32.totalorder %s90, %s91
    %p105 = scmp.eq.s32.totalorder %s15, 1
    %p106 = por %p104, %p105
    %p108 = scmp.ne.s32.totalorder %s91, %s107
    %p109 = scmp.eq.s32.totalorder %s15, 0
    %p110 = por %p108, %p109
    %p111 = scmp.le.s32.totalorder 1, %s9
    %p112 = scmp.lt.s32.totalorder %s9, 3
    %p113 = pnand %p111, %p112
    %p114 = pneg %p113
    // Predicated region
    $region9: #{tpu_custom_call.1} parent=5 // pred_check
      _
    $region10: #{tpu_custom_call.1} parent=5 // pred_check_branch
      %116 = sbr.rel (%p113) target = $region12
    $region11: #{tpu_custom_call.1} parent=5 // pred_region
      %s117 = ssub.s32 %s9, 1
      // Predicated region
      $region13: #{tpu_custom_call.1} parent=11 // pred_check
        %p118 = pneg %p56
      $region14: #{tpu_custom_call.1} parent=11 // pred_check_branch
        %120 = sbr.rel (%p118) target = $region16
      $region15: #{tpu_custom_call.1} parent=11 // pred_region
        _
      $region16: #{tpu_custom_call.1} parent=11 // pred_fallthru
        _
      // Predicated region
      $region17: #{tpu_custom_call.1} parent=11 // pred_check
        %p121 = pneg %p77
      $region18: #{tpu_custom_call.1} parent=11 // pred_check_branch
        %123 = sbr.rel (%p121) target = $region20
      $region19: #{tpu_custom_call.1} parent=11 // pred_region
        _
      $region20: #{tpu_custom_call.1} parent=11 // pred_fallthru
        _
    $region12: #{tpu_custom_call.1} parent=5 // pred_fallthru
      _
    %p124 = scmp.lt.s32.totalorder %s9, 2
    // Predicated region
    $region21: #{tpu_custom_call.1} parent=5 // pred_check
      %p125 = pneg %p124
    $region22: #{tpu_custom_call.1} parent=5 // pred_check_branch
      %127 = sbr.rel (%p125) target = $region24
    $region23: #{tpu_custom_call.1} parent=5 // pred_region
      // Predicated region
      $region25: #{tpu_custom_call.1} parent=23 // pred_check
        %p128 = pneg %p29
      $region26: #{tpu_custom_call.1} parent=23 // pred_check_branch
        %130 = sbr.rel (%p128) target = $region28
      $region27: #{tpu_custom_call.1} parent=23 // pred_region
        %p131 = scmp.lt.s32.totalorder %s9, 1
        %s132 = scalar_select %p131, %s9, 1
        %s133 = smul.addr %s132, 2
        %s134 = scalar_lea.vmem %s0, %s133
      $region28: #{tpu_custom_call.1} parent=23 // pred_fallthru
        _
    $region24: #{tpu_custom_call.1} parent=5 // pred_fallthru
      _
    %p135 = scmp.le.s32.totalorder 1, %s9
    %p136 = scmp.lt.s32.totalorder %s9, 3
    %p137 = pnand %p135, %p136
    %p138 = pneg %p137
    // Predicated region
    $region29: #{tpu_custom_call.1} parent=5 // pred_check
      _
    $region30: #{tpu_custom_call.1} parent=5 // pred_check_branch
      %140 = sbr.rel (%p137) target = $region32
    $region31: #{tpu_custom_call.1} parent=5 // pred_region
      %s141 = ssub.s32 %s9, 1
      %p142 = scmp.lt.s32.totalorder %s14, 1
      %s143 = scalar_select %p142, %s14, 1
      %s144 = smul.addr %s143, 2
      %s145 = scalar_lea.vmem %s0, %s144
      %p146 = pneg %p35
      %p147 = pneg %p32
      %p148 = pneg %p56
      %p149 = pneg %p53
      %p150 = pneg %p77
      %p151 = pneg %p74
      %p152 = pneg %p103
      %p153 = pneg %p100
      %p154 = scmp.lt.s32.totalorder %s14, 1
      %s155 = scalar_select %p154, %s14, 1
      %s156 = smul.addr %s155, 3
      %s157 = smul.addr %s156, 8
      %s158 = scalar_lea.vmem %s3, %s157
      %p159 = scmp.lt.s32.totalorder %s14, 1
      %s160 = scalar_select %p159, %s14, 1
      %s161 = smul.addr %s160, 2
      %s162 = scalar_lea.vmem %s0, %s161
      %p163 = scmp.lt.s32.totalorder %s14, 1
      %s164 = scalar_select %p163, %s14, 1
      %s165 = smul.addr %s164, 3
      %s166 = smul.addr %s165, 8
      %s167 = scalar_lea.vmem %s3, %s166
      %v169 = vld [vmem:[%s162] sm:$0x3]
      %vm170 = vcmask 123904
      %171 = vst.msk [vmem:[#allocation2] sm:$0x3] %vm170, %v169
      %v172 = vld [vmem:[%s162] sm:$0x3]
      %s174 = scalar_lea.vmem [#allocation1], 1
      %175 = vst [vmem:[%s174] ss:$2 sm:$0xff] %v172
      %v176 = vld.sshfl [vmem:[#allocation1] sm:$0xff pattern:$0x75643120]
      %178 = vrot.lane.b32.xlu0 %v176, 127
      %v179 = vpop.permute.xlu0 %178
      %vm181 = vcmask 125954
      %182 = vst.msk [vmem:[#allocation2] sm:$0xc] %vm181, %v179
      %v183 = vld [vmem:[%s162] sm:$0x3]
      %185 = vst [vmem:[#allocation1] ss:$2 sm:$0xff] %v183
      %v186 = vld.sshfl [vmem:[#allocation1] sm:$0xff pattern:$0x75643120]
      %188 = vrot.lane.b32.xlu0 %v186, 126
      %v189 = vpop.permute.xlu0 %188
      %191 = vst.msk [vmem:[#allocation2 + $0x4] sm:$0x3] %vm170, %v189
      %v192 = vld [vmem:[%s162] sm:$0x3]
      %s194 = scalar_lea.vmem [#allocation1], 1
      %195 = vst [vmem:[%s194] ss:$2 sm:$0xff] %v192
      %v196 = vld.sshfl [vmem:[#allocation1] sm:$0xff pattern:$0x75643120]
      %198 = vrot.lane.b32.xlu0 %v196, 125
      %v199 = vpop.permute.xlu0 %198
      %201 = vst.msk [vmem:[#allocation2 + $0x4] sm:$0xc] %vm181, %v199
      %v202 = vld [vmem:[%s162] sm:$0x3]
      %204 = vst [vmem:[#allocation1] ss:$2 sm:$0xff] %v202
      %v205 = vld.sshfl [vmem:[#allocation1] sm:$0xff pattern:$0x75643120]
      %207 = vrot.lane.b32.xlu0 %v205, 124
      %v208 = vpop.permute.xlu0 %207
      %210 = vst.msk [vmem:[#allocation2 + $0x8] sm:$0x3] %vm170, %v208
      %v211 = vld [vmem:[%s162] sm:$0x3]
      %s213 = scalar_lea.vmem [#allocation1], 1
      %214 = vst [vmem:[%s213] ss:$2 sm:$0xff] %v211
      %v215 = vld.sshfl [vmem:[#allocation1] sm:$0xff pattern:$0x75643120]
      %217 = vrot.lane.b32.xlu0 %v215, 123
      %v218 = vpop.permute.xlu0 %217
      %220 = vst.msk [vmem:[#allocation2 + $0x8] sm:$0xc] %vm181, %v218
      %v221 = vld [vmem:[%s162] sm:$0x3]
      %223 = vst [vmem:[#allocation1] ss:$2 sm:$0xff] %v221
      %v224 = vld.sshfl [vmem:[#allocation1] sm:$0xff pattern:$0x75643120]
      %226 = vrot.lane.b32.xlu0 %v224, 122
      %v227 = vpop.permute.xlu0 %226
      %229 = vst.msk [vmem:[#allocation2 + $0xc] sm:$0x3] %vm170, %v227
      %v230 = vld [vmem:[%s1] sm:$0xf]
      %v231 = vld [vmem:[%s1 + $0x4] sm:$0xf]
      %v232 = vld [vmem:[%s1 + $0x8] sm:$0x7]
      %v233 = vld [vmem:[#allocation2] sm:$0xf]
      %v234 = vld [vmem:[#allocation2 + $0x4] sm:$0xf]
      %v235 = vld [vmem:[#allocation2 + $0x8] sm:$0xf]
      %v236 = vld [vmem:[#allocation2 + $0xc] sm:$0x3]
      %v237 = vld [vmem:[%s2] sm:$0xff]
      %v238 = vld [vmem:[%s2 + $0x8] sm:$0xff]
      %v239 = vld [vmem:[%s2 + $0x10] sm:$0x3f]
      %241 = vset.pattern.permute.xlu0 0
      %242 = vperm.xlu0 %241, %v237
      %v243 = vpop.permute.xlu0 %242
      %246 = vset.pattern.permute.xlu0 0
      %247 = vperm.xlu0 %246, %v238
      %v248 = vpop.permute.xlu0 %247
      %251 = vset.pattern.permute.xlu0 0
      %252 = vperm.xlu0 %251, %v239
      %v253 = vpop.permute.xlu0 %252
      %v258 = vunpack.c.l.b16 %v230
      %v259 = vunpack.c.l.b16 %v231
      %v260 = vunpack.c.l.b16 %v232
      %v261 = vpack.c.b16 %v259, %v258
      %v262 = vpack.c.b16 %v260, %v260
      %v267 = vunpack.c.l.b16 %v233
      %v268 = vunpack.c.l.b16 %v234
      %v269 = vunpack.c.l.b16 %v235
      %v270 = vunpack.c.l.b16 %v236
      %v271 = vpack.c.b16 %v268, %v267
      %v272 = vpack.c.b16 %v270, %v269
      %vm274 = vcmask 228352
      %v276 = vsel %vm274, %v261, 0
      %v279 = vsel %vm274, %v262, 0
      %vm281 = vcmask 1045504
      %v283 = vsel %vm281, %v272, 0
      %285 = vmatpush.bf16.msra.mxu0 0
      %286 = vmatpush.bf16.msra.mxu0 0
      %287 = vmatpush.bf16.msra.mxu0 0
      %288 = vmatpush.bf16.msra.mxu0 0
      %289 = vmatpush.bf16.msra.mxu0 0
      %290 = vmatpush.bf16.msra.mxu0 0
      %291 = vmatpush.bf16.msra.mxu0 %v283
      %292 = vmatpush.bf16.msra.mxu0 %v271
      %293 = vmatmul.bf16.gmra.mxu0 %v276
      %v294 = vpop.f32.mrf.mxu0
      %v295 = vadd.f32 %v243, %v294
      %v296 = vpop.f32.mrf.mxu0
      %v297 = vadd.f32 %v248, %v296
      %298 = vmatmul.bf16.gmra.mxu0 %v279
      %v299 = vpop.f32.mrf.mxu0
      %v300 = vadd.f32 %v253, %v299
      %v301 = vpop.f32.mrf.mxu0
      %302 = vdwg.mxu0
      %v303 = vmax.f32 %v295, 0.0
      %v304 = vmax.f32 %v297, 0.0
      %v305 = vmax.f32 %v300, 0.0
      %vm306 = vcmask 130048
      %307 = vst.msk [vmem:[%s167] sm:$0xff] %vm306, %v303
      %308 = vst.msk [vmem:[%s167 + $0x8] sm:$0xff] %vm306, %v304
      %vm309 = vcmask 128000
      %310 = vst.msk [vmem:[%s167 + $0x10] sm:$0x3f] %vm309, %v305
      %p311 = scmp.lt.s32.totalorder %s14, 1
      %s312 = scalar_select %p311, %s14, 1
      %s313 = smul.addr %s312, 3
      %s314 = smul.addr %s313, 8
      %s315 = scalar_lea.vmem %s3, %s314
      // Predicated region
      $region33: #{tpu_custom_call.1} parent=31 // pred_check
        %p316 = pneg %p100
      $region34: #{tpu_custom_call.1} parent=31 // pred_check_branch
        %318 = sbr.rel (%p316) target = $region36
      $region35: #{tpu_custom_call.1} parent=31 // pred_region
        _
      $region36: #{tpu_custom_call.1} parent=31 // pred_fallthru
        _
    $region32: #{tpu_custom_call.1} parent=5 // pred_fallthru
      _
    %p319 = scmp.le.s32.totalorder 2, %s9
    // Predicated region
    $region37: #{tpu_custom_call.1} parent=5 // pred_check
      %p320 = pneg %p319
    $region38: #{tpu_custom_call.1} parent=5 // pred_check_branch
      %322 = sbr.rel (%p320) target = $region40
    $region39: #{tpu_custom_call.1} parent=5 // pred_region
      %s323 = ssub.s32 %s9, 2
      // Predicated region
      $region41: #{tpu_custom_call.1} parent=39 // pred_check
        %p324 = pneg %p106
      $region42: #{tpu_custom_call.1} parent=39 // pred_check_branch
        %326 = sbr.rel (%p324) target = $region44
      $region43: #{tpu_custom_call.1} parent=39 // pred_region
        %p327 = scmp.lt.s32.totalorder %s15, 1
        %s328 = scalar_select %p327, %s15, 1
        %s329 = smul.addr %s328, 3
        %s330 = smul.addr %s329, 8
        %s331 = scalar_lea.vmem %s3, %s330
      $region44: #{tpu_custom_call.1} parent=39 // pred_fallthru
        _
    $region40: #{tpu_custom_call.1} parent=5 // pred_fallthru
      _
  $region6: #{tpu_custom_call.1} parent=0 // loop_footer
    %s13 = sadd.s32 1, %s9
  $region7: #{tpu_custom_call.1} parent=0 // loop_footer_branch
    %8 = sbr.rel target = $region3
  $region8: #{tpu_custom_call.1} parent=0 // loop_exit
    _

</llo_original>
